<compile_context>
chip_gen: v7x
topology: tpu7x:2x2x1
jax: 0.10.0
libtpu: 0.0.40
codegen_flags: <defaults>
</compile_context>

<pallas_src>
import jax
import jax.numpy as jnp
from jax.experimental import pallas as pl
from jax.experimental.pallas import tpu as pltpu

EPS = 1e-5  # matches torch.nn.LayerNorm default
_MXU_PRECISION = jax.lax.Precision.HIGHEST


# ---------------------------------------------------------------------------
# Per-chip sizing helpers
# ---------------------------------------------------------------------------
def _vmem_capacity_bytes():
    try:
        info = pltpu.get_tpu_info()
        cap = getattr(info, "vmem_capacity_bytes", None)
        if cap:
            return int(cap)
    except Exception:
        pass
    return 64 * 1024 * 1024  # conservative default (v7x per-TC VMEM)


def _vmem_limit_bytes():
    # Raise the scoped VMEM limit (16/32 MiB default) but keep headroom below
    # physical capacity: ~96 MiB on v5e/v6e (128 MiB phys), ~48 MiB on v7x.
    return int(min(_vmem_capacity_bytes() * 3 // 4, 112 * 1024 * 1024))


def _compiler_params(dimension_semantics):
    return pltpu.CompilerParams(
        dimension_semantics=dimension_semantics,
        vmem_limit_bytes=_vmem_limit_bytes(),
    )


def _pick_tile_rows(rows, bytes_per_row, *, budget=None, cap=1024):
    """Largest row tile (multiple of 8, <= cap) whose slabs fit in VMEM."""
    if budget is None:
        budget = int(_vmem_limit_bytes() * 0.6)
    tile = budget // max(bytes_per_row, 1)
    tile = max(min(tile, cap), 8)
    tile = max((tile // 8) * 8, 8)
    if rows <= tile:
        return rows  # single block; block dims equal full array dims
    return tile


def _pick_tk(hidden):
    """K tile for the fused matmul kernels (multiple of 128 or full hidden)."""
    if hidden <= 1024:
        return hidden
    for tk in (512, 256, 128):
        if hidden % tk == 0:
            return tk
    return hidden  # awkward hidden size: single K block


# ---------------------------------------------------------------------------
# In-kernel LayerNorm helper (single-pass stats, f32)
# ---------------------------------------------------------------------------
def _ln_f32(s, g, b):
    # Single pass: sum and sum-of-squares are independent XLU reductions.
    # Note: E[x^2]-E[x]^2 is slightly less stable than two-pass, but with f32
    # accumulation on LN-scale data the error is ~1e-7.
    h = s.shape[-1]
    inv_h = 1.0 / h
    mean = jnp.sum(s, axis=-1, keepdims=True) * inv_h
    meansq = jnp.sum(s * s, axis=-1, keepdims=True) * inv_h
    var = jnp.maximum(meansq - mean * mean, 0.0)
    return (s - mean) * jax.lax.rsqrt(var + EPS) * g + b


# ---------------------------------------------------------------------------
# Generic kernels (opaque sublayer stays in plain JAX)
# ---------------------------------------------------------------------------
def _layernorm_kernel(x_ref, g_ref, b_ref, o_ref):
    x = x_ref[...].astype(jnp.float32)
    o_ref[...] = _ln_f32(x, g_ref[...], b_ref[...]).astype(o_ref.dtype)


def _add_layernorm_kernel(x_ref, y_ref, g_ref, b_ref, o_ref):
    s = x_ref[...].astype(jnp.float32) + y_ref[...].astype(jnp.float32)
    o_ref[...] = _ln_f32(s, g_ref[...], b_ref[...]).astype(o_ref.dtype)


def _residual_add_kernel(x_ref, y_ref, o_ref):
    o_ref[...] = x_ref[...] + y_ref[...]


def _row_grid_call(kernel, arrays_2d, params_2d, out_dtype):
    rows, hidden = arrays_2d[0].shape
    n_slabs = len(arrays_2d) + 1                       # inputs + output
    bytes_per_row = n_slabs * 2 * hidden * 4           # double-buffered, f32 budget
    tile_rows = _pick_tile_rows(rows, bytes_per_row)
    grid = (pl.cdiv(rows, tile_rows),)

    data_spec = pl.BlockSpec((tile_rows, hidden), lambda i: (i, 0))
    param_spec = pl.BlockSpec((1, hidden), lambda i: (0, 0))

    return pl.pallas_call(
        kernel,
        out_shape=jax.ShapeDtypeStruct((rows, hidden), out_dtype),
        grid_spec=pltpu.PrefetchScalarGridSpec(
            num_scalar_prefetch=0,
            grid=grid,
            in_specs=[data_spec] * len(arrays_2d) + [param_spec] * len(params_2d),
            out_specs=data_spec,
        ),
        compiler_params=_compiler_params(("parallel",)),
    )(*arrays_2d, *params_2d)


def pallas_layernorm(x2d, gamma, beta):
    g = gamma.astype(jnp.float32).reshape(1, -1)
    b = beta.astype(jnp.float32).reshape(1, -1)
    return _row_grid_call(_layernorm_kernel, [x2d], [g, b], x2d.dtype)


def pallas_add_layernorm(x2d, y2d, gamma, beta):
    g = gamma.astype(jnp.float32).reshape(1, -1)
    b = beta.astype(jnp.float32).reshape(1, -1)
    return _row_grid_call(_add_layernorm_kernel, [x2d, y2d], [g, b], x2d.dtype)


def pallas_residual_add(x2d, y2d):
    rows, hidden = x2d.shape
    # Pure elementwise op: present a lane-dense (multiple-of-128) last dim when
    # the hidden size is narrower than the 128-lane vreg width.
    new_rows, new_cols = rows, hidden
    if hidden % 128 != 0:
        total = rows * hidden
        for w in (2048, 1024, 512, 256, 128):
            if total % w == 0:
                new_rows, new_cols = total // w, w
                break
    xv = x2d.reshape(new_rows, new_cols)
    yv = y2d.reshape(new_rows, new_cols)
    out = _row_grid_call(_residual_add_kernel, [xv, yv], [], x2d.dtype)
    return out.reshape(rows, hidden)


# ---------------------------------------------------------------------------
# Fused kernels for a Linear(H, H) sublayer (MXU matmul + bias + residual + LN)
# ---------------------------------------------------------------------------
def _linear_post_ln_kernel(xk_ref, w_ref, xres_ref, bias_ref, g_ref, b_ref,
                           o_ref, acc_ref):
    """acc += x_k @ W_k ; last K step: o = LayerNorm(x + acc + bias)."""
    k = pl.program_id(1)

    @pl.when(k == 0)
    def _():
        acc_ref[...] = jnp.zeros_like(acc_ref)

    acc_ref[...] += jnp.dot(
        xk_ref[...].astype(jnp.float32), w_ref[...].astype(jnp.float32),
        preferred_element_type=jnp.float32, precision=_MXU_PRECISION)

    @pl.when(k == pl.num_programs(1) - 1)
    def _():
        s = xres_ref[...].astype(jnp.float32) + acc_ref[...] + bias_ref[...]
        o_ref[...] = _ln_f32(s, g_ref[...], b_ref[...]).astype(o_ref.dtype)


def _linear_pre_ln_kernel(xk_ref, w_ref, xres_ref, bias_ref, gk_ref, bk_ref,
                          o_ref, acc_ref, mean_ref, inv_ref):
    """Per-row LN stats computed once from the resident full-row block; each K
    step normalizes its x chunk on the fly, acc += LN(x)_k @ W_k; last K step:
    o = x + acc + bias."""
    k = pl.program_id(1)

    @pl.when(k == 0)
    def _():
        x = xres_ref[...].astype(jnp.float32)
        h = x.shape[-1]
        inv_h = 1.0 / h
        mean = jnp.sum(x, axis=-1, keepdims=True) * inv_h
        meansq = jnp.sum(x * x, axis=-1, keepdims=True) * inv_h
        var = jnp.maximum(meansq - mean * mean, 0.0)
        mean_ref[...] = mean
        inv_ref[...] = jax.lax.rsqrt(var + EPS)
        acc_ref[...] = jnp.zeros_like(acc_ref)

    normed_k = ((xk_ref[...].astype(jnp.float32) - mean_ref[...]) * inv_ref[...]
                * gk_ref[...] + bk_ref[...])
    acc_ref[...] += jnp.dot(
        normed_k, w_ref[...].astype(jnp.float32),
        preferred_element_type=jnp.float32, precision=_MXU_PRECISION)

    @pl.when(k == pl.num_programs(1) - 1)
    def _():
        o_ref[...] = (xres_ref[...].astype(jnp.float32)
                      + acc_ref[...] + bias_ref[...]).astype(o_ref.dtype)


def pallas_linear_sublayer_connection(x2d, W, bias, gamma, beta, *, pre_ln):
    """Fully fused residual + LayerNorm + Linear(H -> H) sublayer.

    post-LN:  out = LN(x + (x @ W + bias))
    pre-LN :  out = x + (LN(x) @ W + bias)
    """
    rows, hidden = x2d.shape
    assert W.shape == (hidden, hidden)
    tk = _pick_tk(hidden)
    nk = hidden // tk

    f32 = jnp.float32
    bias2 = bias.astype(f32).reshape(1, hidden)
    g2 = gamma.astype(f32).reshape(1, hidden)
    b2 = beta.astype(f32).reshape(1, hidden)

    itemsize = jnp.dtype(x2d.dtype).itemsize
    w_bytes = 2 * tk * hidden * jnp.dtype(W.dtype).itemsize
    # double-buffered xk / xres / out slabs + f32 accumulator (single buffer)
    bytes_per_row = 2 * (tk + 2 * hidden) * itemsize + hidden * 4
    budget = max(int(_vmem_limit_bytes() * 0.6) - w_bytes, bytes_per_row * 8)
    tile_rows = _pick_tile_rows(rows, bytes_per_row, budget=budget, cap=512)

    grid = (pl.cdiv(rows, tile_rows), nk)

    xk_spec = pl.BlockSpec((tile_rows, tk), lambda i, k: (i, k))
    w_spec = pl.BlockSpec((tk, hidden), lambda i, k: (k, 0))
    xres_spec = pl.BlockSpec((tile_rows, hidden), lambda i, k: (i, 0))
    full_param = pl.BlockSpec((1, hidden), lambda i, k: (0, 0))
    out_spec = pl.BlockSpec((tile_rows, hidden), lambda i, k: (i, 0))

    if pre_ln:
        kernel = _linear_pre_ln_kernel
        gb_spec = pl.BlockSpec((1, tk), lambda i, k: (0, k))
        scratch = [pltpu.VMEM((tile_rows, hidden), f32),
                   pltpu.VMEM((tile_rows, 1), f32),
                   pltpu.VMEM((tile_rows, 1), f32)]
    else:
        kernel = _linear_post_ln_kernel
        gb_spec = full_param
        scratch = [pltpu.VMEM((tile_rows, hidden), f32)]

    return pl.pallas_call(
        kernel,
        out_shape=jax.ShapeDtypeStruct((rows, hidden), x2d.dtype),
        grid_spec=pltpu.PrefetchScalarGridSpec(
            num_scalar_prefetch=0,
            grid=grid,
            in_specs=[xk_spec, w_spec, xres_spec, full_param, gb_spec, gb_spec],
            out_specs=out_spec,
            scratch_shapes=scratch,
        ),
        compiler_params=_compiler_params(("parallel", "arbitrary")),
    )(x2d, W, x2d, bias2, g2, b2)


# ---------------------------------------------------------------------------
# SubLayerConnection (functional)
# ---------------------------------------------------------------------------
def sublayer_connection(x, sublayer, gamma, beta, *, pre_ln=False):
    """Generic path: `sublayer` is an opaque callable and stays in plain JAX;
    the residual / LayerNorm pieces run as (fused where possible) Pallas kernels."""
    B, S, H = x.shape
    x2d = x.reshape(B * S, H)
    if pre_ln:
        normed = pallas_layernorm(x2d, gamma, beta).reshape(B, S, H)
        sub = sublayer(normed)  # TODO(synk): opaque user callable -> plain JAX
        out = pallas_residual_add(x2d, sub.reshape(B * S, H))
    else:
        sub = sublayer(x)       # TODO(synk): opaque user callable -> plain JAX
        out = pallas_add_layernorm(x2d, sub.reshape(B * S, H), gamma, beta)
    return out.reshape(B, S, H)


def sublayer_connection_linear(x, W, bias, gamma, beta, *, pre_ln=False):
    """Fused path for the common Linear sublayer: a single MXU-driven Pallas
    kernel does matmul + bias + residual add (+ LayerNorm), removing the extra
    whole-tensor HBM round trips."""
    B, S, H = x.shape
    out2d = pallas_linear_sublayer_connection(
        x.reshape(B * S, H), W, bias, gamma, beta, pre_ln=pre_ln)
    return out2d.reshape(B, S, H)


# ---------------------------------------------------------------------------
# Pure-JAX reference
# ---------------------------------------------------------------------------
def _layernorm_ref(x, gamma, beta):
    mean = jnp.mean(x, axis=-1, keepdims=True)
    var = jnp.mean((x - mean) ** 2, axis=-1, keepdims=True)
    return (x - mean) * jax.lax.rsqrt(var + EPS) * gamma + beta


def sublayer_connection_ref(x, sublayer, gamma, beta, *, pre_ln=False):
    if pre_ln:
        return x + sublayer(_layernorm_ref(x, gamma, beta))
    return _layernorm_ref(x + sublayer(x), gamma, beta)


if __name__ == "__main__":
    key = jax.random.PRNGKey(0)
    B, S, H = 2, 8, 32

    kx, kw, kb = jax.random.split(key, 3)
    x = jax.random.normal(kx, (B, S, H), dtype=jnp.float32)

    # LayerNorm params: PyTorch default init (weight=1, bias=0).
    gamma = jnp.ones((H,), dtype=jnp.float32)
    beta = jnp.zeros((H,), dtype=jnp.float32)

    # Deterministic "sublayer": a simple Linear(H, H).
    W = jax.random.normal(kw, (H, H), dtype=jnp.float32) * 0.05
    bvec = jax.random.normal(kb, (H,), dtype=jnp.float32) * 0.05
    sublayer = lambda t: jnp.einsum("bsh,hk->bsk", t, W,
                                    precision=_MXU_PRECISION) + bvec

    ok = True
    for pre_ln in (False, True):
        ref = sublayer_connection_ref(x, sublayer, gamma, beta, pre_ln=pre_ln)

        out_gen = jax.block_until_ready(
            sublayer_connection(x, sublayer, gamma, beta, pre_ln=pre_ln))
        ok &= bool(jnp.allclose(out_gen, ref, atol=1e-5, rtol=1e-5))

        out_fused = jax.block_until_ready(
            sublayer_connection_linear(x, W, bvec, gamma, beta, pre_ln=pre_ln))
        # MXU f32 matmul path may differ marginally from the XLA einsum.
        ok &= bool(jnp.allclose(out_fused, ref, atol=1e-3, rtol=1e-3))

    assert ok, "Pallas SubLayerConnection mismatch vs. pure-JAX reference"
    print("KERNEL_OK")
</pallas_src>

<mosaic_0001>
module attributes {stable_mosaic.version = 11 : i64} {
  func.func @_add_layernorm_kernel(%arg0: i32, %arg1: memref<16x32xf32, #tpu.memory_space<vmem>>, %arg2: memref<16x32xf32, #tpu.memory_space<vmem>>, %arg3: memref<1x32xf32, #tpu.memory_space<vmem>>, %arg4: memref<1x32xf32, #tpu.memory_space<vmem>>, %arg5: memref<16x32xf32, #tpu.memory_space<vmem>>) attributes {dimension_semantics = [#tpu.dimension_semantics<parallel>], iteration_bounds = array<i64: 1>, scalar_prefetch = 0 : i64, scratch_operands = 0 : i64, tpu.core_type = #tpu.core_type<tc>, window_params = [{transform_indices = @transform_0, window_bounds = array<i64: 16, 32>}, {transform_indices = @transform_1, window_bounds = array<i64: 16, 32>}, {pipeline_mode = #tpu.pipeline_mode<synchronous>, transform_indices = @transform_2, window_bounds = array<i64: 1, 32>}, {pipeline_mode = #tpu.pipeline_mode<synchronous>, transform_indices = @transform_3, window_bounds = array<i64: 1, 32>}, {transform_indices = @transform_4, window_bounds = array<i64: 16, 32>}]} {
    %c0 = arith.constant 0 : index
    %c0_0 = arith.constant 0 : index
    %0 = vector.load %arg1[%c0, %c0_0] : memref<16x32xf32, #tpu.memory_space<vmem>>, vector<16x32xf32>
    %c0_1 = arith.constant 0 : index
    %c0_2 = arith.constant 0 : index
    %1 = vector.load %arg2[%c0_1, %c0_2] : memref<16x32xf32, #tpu.memory_space<vmem>>, vector<16x32xf32>
    %2 = arith.addf %0, %1 : vector<16x32xf32>
    %c0_3 = arith.constant 0 : index
    %c0_4 = arith.constant 0 : index
    %3 = vector.load %arg3[%c0_3, %c0_4] : memref<1x32xf32, #tpu.memory_space<vmem>>, vector<1x32xf32>
    %c0_5 = arith.constant 0 : index
    %c0_6 = arith.constant 0 : index
    %4 = vector.load %arg4[%c0_5, %c0_6] : memref<1x32xf32, #tpu.memory_space<vmem>>, vector<1x32xf32>
    %cst = arith.constant dense<0.000000e+00> : vector<16xf32>
    %5 = vector.multi_reduction <add>, %2, %cst [1] : vector<16x32xf32> to vector<16xf32>
    %6 = vector.shape_cast %5 : vector<16xf32> to vector<16x1xf32>
    %cst_7 = arith.constant 3.125000e-02 : f32
    %7 = vector.broadcast %cst_7 : f32 to vector<16x1xf32>
    %8 = arith.mulf %6, %7 : vector<16x1xf32>
    %9 = arith.mulf %2, %2 : vector<16x32xf32>
    %cst_8 = arith.constant dense<0.000000e+00> : vector<16xf32>
    %10 = vector.multi_reduction <add>, %9, %cst_8 [1] : vector<16x32xf32> to vector<16xf32>
    %11 = vector.shape_cast %10 : vector<16xf32> to vector<16x1xf32>
    %cst_9 = arith.constant 3.125000e-02 : f32
    %12 = vector.broadcast %cst_9 : f32 to vector<16x1xf32>
    %13 = arith.mulf %11, %12 : vector<16x1xf32>
    %14 = arith.mulf %8, %8 : vector<16x1xf32>
    %15 = arith.subf %13, %14 : vector<16x1xf32>
    %cst_10 = arith.constant 0.000000e+00 : f32
    %16 = vector.broadcast %cst_10 : f32 to vector<16x1xf32>
    %17 = arith.maximumf %15, %16 : vector<16x1xf32>
    %18 = vector.broadcast %8 : vector<16x1xf32> to vector<16x32xf32>
    %19 = arith.subf %2, %18 : vector<16x32xf32>
    %cst_11 = arith.constant 9.99999974E-6 : f32
    %20 = vector.broadcast %cst_11 : f32 to vector<16x1xf32>
    %21 = arith.addf %17, %20 : vector<16x1xf32>
    %22 = math.rsqrt %21 : vector<16x1xf32>
    %23 = vector.broadcast %22 : vector<16x1xf32> to vector<16x32xf32>
    %24 = arith.mulf %19, %23 : vector<16x32xf32>
    %25 = vector.broadcast %3 : vector<1x32xf32> to vector<16x32xf32>
    %26 = arith.mulf %24, %25 : vector<16x32xf32>
    %27 = vector.broadcast %4 : vector<1x32xf32> to vector<16x32xf32>
    %28 = arith.addf %26, %27 : vector<16x32xf32>
    %c0_12 = arith.constant 0 : index
    %c0_13 = arith.constant 0 : index
    %29 = vector.load %arg5[%c0_12, %c0_13] : memref<16x32xf32, #tpu.memory_space<vmem>>, vector<16x32xf32>
    tpu.vector_store %arg5[%c0_12, %c0_13], %28 {strides = array<i32>} : memref<16x32xf32, #tpu.memory_space<vmem>>, vector<16x32xf32>,
    return
  }
  func.func @transform_0(%arg0: i32) -> (i32, i32) {
    %c0_i32 = arith.constant 0 : i32
    %c0_i32_0 = arith.constant 0 : i32
    return %arg0, %c0_i32 : i32, i32
  }
  func.func @transform_1(%arg0: i32) -> (i32, i32) {
    %c0_i32 = arith.constant 0 : i32
    %c0_i32_0 = arith.constant 0 : i32
    return %arg0, %c0_i32 : i32, i32
  }
  func.func @transform_2(%arg0: i32) -> (i32, i32) {
    %c0_i32 = arith.constant 0 : i32
    %c0_i32_0 = arith.constant 0 : i32
    %c0_i32_1 = arith.constant 0 : i32
    return %c0_i32, %c0_i32_0 : i32, i32
  }
  func.func @transform_3(%arg0: i32) -> (i32, i32) {
    %c0_i32 = arith.constant 0 : i32
    %c0_i32_0 = arith.constant 0 : i32
    %c0_i32_1 = arith.constant 0 : i32
    return %c0_i32, %c0_i32_0 : i32, i32
  }
  func.func @transform_4(%arg0: i32) -> (i32, i32) {
    %c0_i32 = arith.constant 0 : i32
    %c0_i32_0 = arith.constant 0 : i32
    return %arg0, %c0_i32 : i32, i32
  }
}

</mosaic_0001>

<llo_original>
// kernel: tpu_custom_call.1
$region0: #{tpu_custom_call.1}
  #allocation0 [shape = 'u32[]', space=smem, size = 0x4, offset = 0x4, fixed_abs, tag = 'smem constant byte address 0x4 - core index']
  #allocation1 [shape = 'u32[144,128]{1,0:T(1,128)}', space=vmem, size = 0x12000, scoped, tag = 'internal scratch']
  %s0 = inlined_call_operand.hbm [shape: f32[16,32], index: 0, kind: input, shape index: {}]
  %s1 = inlined_call_operand.hbm [shape: f32[16,32], index: 1, kind: input, shape index: {}]
  %s2 = inlined_call_operand.vmem [shape: f32[1,32], index: 2, kind: input, shape index: {}]
  %s3 = inlined_call_operand.vmem [shape: f32[1,32], index: 3, kind: input, shape index: {}]
  %s4 = inlined_call_operand.hbm [shape: f32[16,32], index: 4, kind: output, shape index: {}]
  %s5 = sld [smem:[#allocation0]]
  $region34: #{tpu_custom_call.1} parent=0
    _
  %s7 = ssub.s32 1, %s5
  %s8 = scalar_select 0, %s7, %s5
  $region1: #{tpu_custom_call.1} parent=0
    #allocation2 [shape = 'u8[8192]{0}', space=vmem, size = 0x2000, scoped, tag = 'input window, operand 0, single buffered']
    #allocation3 [shape = 's32[1]{0}', space=sflag, size = 0x4, scoped, tag = 'scoped memory for tpu_custom_call.1']
    #allocation4 [shape = 's32[1]{0}', space=sflag, size = 0x4, scoped, tag = 'scoped memory for tpu_custom_call.1']
    #allocation5 [shape = 'u8[8192]{0}', space=vmem, size = 0x2000, scoped, tag = 'input window, operand 1, single buffered']
    #allocation6 [shape = 's32[1]{0}', space=sflag, size = 0x4, scoped, tag = 'scoped memory for tpu_custom_call.1']
    #allocation7 [shape = 'u8[8192]{0}', space=vmem, size = 0x2000, scoped, tag = 'output window, operand 0, single buffered']
    %9 = vsyncpa [#allocation3], 0
    %10 = vsyncpa [#allocation6], 0
    %11 = vsyncpa [#allocation4], 0
    // Predicated region
    $region2: #{tpu_custom_call.1} parent=1 // pred_check
      _
    $region3: #{tpu_custom_call.1} parent=1 // pred_check_branch
      %13 = sbr.rel (0) target = $region5
    $region4: #{tpu_custom_call.1} parent=1 // pred_region
      %s15 = ssub.s32 256, 256
      %16 = vsyncadd [#allocation3], %s15
      %s17 = sshll.u32 [#allocation2], 4
      %s18 = int_to_ptr.vmem [resolvable:$true] %s17
      %23 = dma.hbm_to_vmem [thread:$0]  %s0, 256, %s18, [#allocation3], 128, 128, 8
    $region5: #{tpu_custom_call.1} parent=1 // pred_fallthru
      _
    // Predicated region
    $region6: #{tpu_custom_call.1} parent=1 // pred_check
      _
    $region7: #{tpu_custom_call.1} parent=1 // pred_check_branch
      %25 = sbr.rel (0) target = $region9
    $region8: #{tpu_custom_call.1} parent=1 // pred_region
      %s27 = ssub.s32 256, 256
      %28 = vsyncadd [#allocation6], %s27
      %s29 = sshll.u32 [#allocation5], 4
      %s30 = int_to_ptr.vmem [resolvable:$true] %s29
      %35 = dma.hbm_to_vmem [thread:$0]  %s1, 256, %s30, [#allocation6], 128, 128, 8
    $region9: #{tpu_custom_call.1} parent=1 // pred_fallthru
      _
    // Predicated region
    $region10: #{tpu_custom_call.1} parent=1 // pred_check
      _
    $region11: #{tpu_custom_call.1} parent=1 // pred_check_branch
      %37 = sbr.rel (0) target = $region13
    $region12: #{tpu_custom_call.1} parent=1 // pred_region
      _
    $region13: #{tpu_custom_call.1} parent=1 // pred_fallthru
      _
    // Predicated region
    $region14: #{tpu_custom_call.1} parent=1 // pred_check
      _
    $region15: #{tpu_custom_call.1} parent=1 // pred_check_branch
      %39 = sbr.rel (0) target = $region17
    $region16: #{tpu_custom_call.1} parent=1 // pred_region
      _
    $region17: #{tpu_custom_call.1} parent=1 // pred_fallthru
      _
    // Predicated region
    $region18: #{tpu_custom_call.1} parent=1 // pred_check
      _
    $region19: #{tpu_custom_call.1} parent=1 // pred_check_branch
      %41 = sbr.rel (0) target = $region21
    $region20: #{tpu_custom_call.1} parent=1 // pred_region
      %42 = dma.done [#allocation3], 256
    $region21: #{tpu_custom_call.1} parent=1 // pred_fallthru
      _
    // Predicated region
    $region22: #{tpu_custom_call.1} parent=1 // pred_check
      _
    $region23: #{tpu_custom_call.1} parent=1 // pred_check_branch
      %44 = sbr.rel (0) target = $region25
    $region24: #{tpu_custom_call.1} parent=1 // pred_region
      %45 = dma.done [#allocation6], 256
    $region25: #{tpu_custom_call.1} parent=1 // pred_fallthru
      _
    %v46 = vld [vmem:[#allocation2] sm:$0xff]
    %v47 = vld [vmem:[#allocation2 + $0x8] sm:$0xff]
    %v48 = vld [vmem:[#allocation5] sm:$0xff]
    %v49 = vld [vmem:[#allocation5 + $0x8] sm:$0xff]
    %v50 = vadd.f32 %v46, %v48
    %v51 = vadd.f32 %v47, %v49
    %v52 = vld [vmem:[%s2] sm:$0x1]
    %v53 = vld [vmem:[%s3] sm:$0x1]
    %vm54 = vcmask 261120
    %v55 = vsel %vm54, %v50, 0.0
    %56 = vadd.xlane.f32.xlu0 %v55
    %v57 = vpop.xlane.xlu0 %56
    %v58 = vsel %vm54, %v51, 0.0
    %59 = vadd.xlane.f32.xlu0 %v58
    %v60 = vpop.xlane.xlu0 %59
    %v61 = vmul.f32 %v57, 0.03125
    %v62 = vmul.f32 %v60, 0.03125
    %v63 = vmul.f32 %v50, %v50
    %v64 = vmul.f32 %v51, %v51
    %v65 = vsel %vm54, %v63, 0.0
    %66 = vadd.xlane.f32.xlu0 %v65
    %v67 = vpop.xlane.xlu0 %66
    %v68 = vsel %vm54, %v64, 0.0
    %69 = vadd.xlane.f32.xlu0 %v68
    %v70 = vpop.xlane.xlu0 %69
    %v71 = vmul.f32 %v67, 0.03125
    %v72 = vmul.f32 %v70, 0.03125
    %v73 = vmul.f32 %v61, %v61
    %v74 = vmul.f32 %v62, %v62
    %v75 = vsub.f32 %v71, %v73
    %v76 = vsub.f32 %v72, %v74
    %v77 = vmax.f32 %v75, 0.0
    %v78 = vmax.f32 %v76, 0.0
    %v79 = vsub.f32 %v50, %v61
    %v80 = vsub.f32 %v51, %v62
    %v81 = vadd.f32 %v77, 1e-05
    %v82 = vadd.f32 %v78, 1e-05
    %v83 = vrsqrt.pop %v81
    %v84 = vrsqrt.pop %v82
    %v85 = vmul.f32 %v79, %v83
    %v86 = vmul.f32 %v80, %v84
    %v88 = vlaneseq
    %v89 = vshrl.u32 %v88, 7
    %v90 = vsub.s32 0, %v89
    %v91 = vrot.slane %v52, %v90
    %v93 = vmul.f32 %v85, %v91
    %v94 = vmul.f32 %v86, %v91
    %v96 = vlaneseq
    %v97 = vshrl.u32 %v96, 7
    %v98 = vsub.s32 0, %v97
    %v99 = vrot.slane %v53, %v98
    %v101 = vadd.f32 %v93, %v99
    %v102 = vadd.f32 %v94, %v99
    %103 = vst.msk [vmem:[#allocation7] sm:$0xff] %vm54, %v101
    %104 = vst.msk [vmem:[#allocation7 + $0x8] sm:$0xff] %vm54, %v102
    // Predicated region
    $region26: #{tpu_custom_call.1} parent=1 // pred_check
      _
    $region27: #{tpu_custom_call.1} parent=1 // pred_check_branch
      %106 = sbr.rel (0) target = $region29
    $region28: #{tpu_custom_call.1} parent=1 // pred_region
      %s108 = ssub.s32 256, 256
      %109 = vsyncadd [#allocation4], %s108
      %s110 = sshll.u32 [#allocation7], 4
      %s111 = int_to_ptr.vmem [resolvable:$true] %s110
      %116 = dma.vmem_to_hbm [thread:$0]  %s111, 256, %s4, [#allocation4], 128, 128, 8
    $region29: #{tpu_custom_call.1} parent=1 // pred_fallthru
      _
    // Predicated region
    $region30: #{tpu_custom_call.1} parent=1 // pred_check
      _
    $region31: #{tpu_custom_call.1} parent=1 // pred_check_branch
      %118 = sbr.rel (0) target = $region33
    $region32: #{tpu_custom_call.1} parent=1 // pred_region
      %119 = dma.done [#allocation4], 256
    $region33: #{tpu_custom_call.1} parent=1 // pred_fallthru
      _
    %120 = vsyncpa [#allocation3], 1
    %121 = vsyncpa [#allocation6], 1
    %122 = vsyncpa [#allocation4], 1

</llo_original>
